<compile_context>
chip_gen: v6e
topology: v6e:2x2x1
jax: 0.10.0
libtpu: 0.0.40
codegen_flags: <defaults>
</compile_context>

<pallas_src>
import jax
import jax.numpy as jnp
from jax.experimental import pallas as pl
from jax.experimental.pallas import tpu as pltpu


def _round_up(x, m):
    return ((x + m - 1) // m) * m


def _mm_classifier_kernel(z_ref, w1_ref, b1_ref, w2_ref, b2_ref, wc_ref, bc_ref,
                          out_ref):
    z = z_ref[...]                                      # (TB, Dp) f32 latent tile

    # h = relu(proj1(z))   -- bf16 operands, f32 accumulate on the MXU.
    h = jnp.dot(z.astype(w1_ref.dtype), w1_ref[...],
                preferred_element_type=jnp.float32) + b1_ref[...]
    h = jnp.maximum(h, 0.0)

    # enc = proj2(h) + z   (residual in f32), then relu.
    enc = jnp.dot(h.astype(w2_ref.dtype), w2_ref[...],
                  preferred_element_type=jnp.float32) + b2_ref[...]
    enc = jnp.maximum(enc + z, 0.0)

    # classifier: (D -> 1) as VPU multiply + lane reduce.
    cls = jnp.sum(enc * wc_ref[...], axis=-1, keepdims=True) + bc_ref[0, 0]

    # Lane-dense store: broadcast the single class column across 128 lanes;
    # the wrapper slices column 0.
    out_ref[...] = jnp.broadcast_to(cls, out_ref.shape).astype(out_ref.dtype)


def mm_classifier_forward(z, w1, b1, w2, b2, wc, bc, *,
                          block_b=256, weight_dtype=jnp.bfloat16):
    """MMClassifier head.  Returns (classification (B, 1) f32, z unchanged).

    z : (B, D) latent from model.encode(x)
    w1, w2 : (D, D) proj weights stored as (in, out)  (nn.Linear weight.T)
    b1, b2 : (1, D) biases
    wc : (D, 1) classifier weight (in, out);  bc : (1, 1) classifier bias
    """
    B, D = z.shape
    Dp = max(128, _round_up(D, 128))          # full lane width for all matmuls
    TB = min(block_b, _round_up(B, 8))        # batch tile (sublane-aligned)
    Bp = _round_up(B, TB)

    f32 = jnp.float32
    zp  = jnp.zeros((Bp, Dp), f32).at[:B, :D].set(z.astype(f32))
    w1p = jnp.zeros((Dp, Dp), weight_dtype).at[:D, :D].set(w1.astype(weight_dtype))
    b1p = jnp.zeros((1, Dp), f32).at[:, :D].set(b1.astype(f32))
    w2p = jnp.zeros((Dp, Dp), weight_dtype).at[:D, :D].set(w2.astype(weight_dtype))
    b2p = jnp.zeros((1, Dp), f32).at[:, :D].set(b2.astype(f32))
    wcp = jnp.zeros((1, Dp), f32).at[:, :D].set(wc.reshape(1, D).astype(f32))
    bcp = bc.reshape(1, 1).astype(f32)

    grid = (Bp // TB,)
    resident = lambda shape: pl.BlockSpec(shape, lambda i: (0, 0))  # VMEM-resident

    out_padded = pl.pallas_call(
        _mm_classifier_kernel,
        out_shape=jax.ShapeDtypeStruct((Bp, 128), f32),
        grid=grid,
        in_specs=[
            pl.BlockSpec((TB, Dp), lambda i: (i, 0)),     # z batch tile (pipelined)
            resident((Dp, Dp)),                           # w1
            resident((1, Dp)),                            # b1
            resident((Dp, Dp)),                           # w2
            resident((1, Dp)),                            # b2
            resident((1, Dp)),                            # classifier weight row
            pl.BlockSpec(memory_space=pltpu.SMEM),        # classifier bias scalar
        ],
        out_specs=pl.BlockSpec((TB, 128), lambda i: (i, 0)),
        compiler_params=pltpu.CompilerParams(
            dimension_semantics=("parallel",),            # megacore on v7x
        ),
    )(zp, w1p, b1p, w2p, b2p, wcp, bcp)

    classification = out_padded[:B, 0:1]
    return classification, z        # z returned directly; no kernel writeback


def init_params(key, latent_dimension):
    """Deterministic nn.Linear-style init; weights stored as (in, out)."""
    D = latent_dimension
    k1, k2, k3, k4, k5, k6 = jax.random.split(key, 6)
    bound = 1.0 / jnp.sqrt(D)
    w1 = jax.random.uniform(k1, (D, D), jnp.float32, -bound, bound)
    b1 = jax.random.uniform(k2, (1, D), jnp.float32, -bound, bound)
    w2 = jax.random.uniform(k3, (D, D), jnp.float32, -bound, bound)
    b2 = jax.random.uniform(k4, (1, D), jnp.float32, -bound, bound)
    wc = jax.random.uniform(k5, (D, 1), jnp.float32, -bound, bound)
    bc = jax.random.uniform(k6, (1, 1), jnp.float32, -bound, bound)
    return w1, b1, w2, b2, wc, bc


def reference_forward_f32(z, w1, b1, w2, b2, wc, bc):
    """Exact (f32) module semantics."""
    h = jnp.maximum(z @ w1 + b1, 0.0)
    enc = h @ w2 + b2 + z
    return jnp.maximum(enc, 0.0) @ wc + bc, z


def reference_forward_bf16(z, w1, b1, w2, b2, wc, bc):
    """Reference matching the kernel's bf16-operand / f32-accumulate numerics."""
    bf = jnp.bfloat16
    h = jnp.dot(z.astype(bf), w1.astype(bf), preferred_element_type=jnp.float32) + b1
    h = jnp.maximum(h, 0.0)
    enc = jnp.dot(h.astype(bf), w2.astype(bf), preferred_element_type=jnp.float32) + b2
    enc = jnp.maximum(enc + z, 0.0)
    cls = jnp.sum(enc * wc.reshape(1, -1), axis=-1, keepdims=True) + bc.reshape(1, 1)
    return cls, z


if __name__ == "__main__":
    B, D = 8, 32  # small shapes consistent with the module (latent_dimension=32)
    key = jax.random.PRNGKey(0)
    kz, kp = jax.random.split(key)
    z = jax.random.normal(kz, (B, D), dtype=jnp.float32)  # latent from model.encode
    params = init_params(kp, D)

    out, z_out = mm_classifier_forward(z, *params)
    out = jax.block_until_ready(out)
    z_out = jax.block_until_ready(z_out)

    ref_bf16, _ = reference_forward_bf16(z, *params)
    ref_f32, ref_z = reference_forward_f32(z, *params)

    assert out.shape == (B, 1)
    assert z_out.shape == (B, D)
    # Check against a numerics-matched (bf16 operands, f32 accumulate) reference.
    assert jnp.allclose(out, ref_bf16, atol=2e-3, rtol=2e-3)
    # Loose check against exact f32 module semantics (bf16 weight quantization error).
    assert jnp.allclose(out, ref_f32, atol=5e-2, rtol=5e-2)
    assert jnp.allclose(z_out, ref_z, atol=0.0, rtol=0.0)

    print("KERNEL_OK")
</pallas_src>

<mosaic_0001>
module attributes {stable_mosaic.version = 11 : i64} {
  func.func @_mm_classifier_kernel(%arg0: i32, %arg1: memref<8x128xf32, #tpu.memory_space<vmem>>, %arg2: memref<128x128xbf16, #tpu.memory_space<vmem>>, %arg3: memref<1x128xf32, #tpu.memory_space<vmem>>, %arg4: memref<128x128xbf16, #tpu.memory_space<vmem>>, %arg5: memref<1x128xf32, #tpu.memory_space<vmem>>, %arg6: memref<1x128xf32, #tpu.memory_space<vmem>>, %arg7: memref<1x1xf32, #tpu.memory_space<smem>>, %arg8: memref<8x128xf32, #tpu.memory_space<vmem>>) attributes {dimension_semantics = [#tpu.dimension_semantics<parallel>], iteration_bounds = array<i64: 1>, scalar_prefetch = 0 : i64, scratch_operands = 0 : i64, tpu.core_type = #tpu.core_type<tc>, window_params = [{transform_indices = @transform_0, window_bounds = array<i64: 8, 128>}, {pipeline_mode = #tpu.pipeline_mode<synchronous>, transform_indices = @transform_1, window_bounds = array<i64: 128, 128>}, {pipeline_mode = #tpu.pipeline_mode<synchronous>, transform_indices = @transform_2, window_bounds = array<i64: 1, 128>}, {pipeline_mode = #tpu.pipeline_mode<synchronous>, transform_indices = @transform_3, window_bounds = array<i64: 128, 128>}, {pipeline_mode = #tpu.pipeline_mode<synchronous>, transform_indices = @transform_4, window_bounds = array<i64: 1, 128>}, {pipeline_mode = #tpu.pipeline_mode<synchronous>, transform_indices = @transform_5, window_bounds = array<i64: 1, 128>}, {transform_indices = @transform_6, window_bounds = array<i64: 1, 1>}, {transform_indices = @transform_7, window_bounds = array<i64: 8, 128>}]} {
    %c0 = arith.constant 0 : index
    %c0_0 = arith.constant 0 : index
    %0 = vector.load %arg1[%c0, %c0_0] : memref<8x128xf32, #tpu.memory_space<vmem>>, vector<8x128xf32>
    %1 = arith.truncf %0 : vector<8x128xf32> to vector<8x128xbf16>
    %c0_1 = arith.constant 0 : index
    %c0_2 = arith.constant 0 : index
    %2 = vector.load %arg2[%c0_1, %c0_2] : memref<128x128xbf16, #tpu.memory_space<vmem>>, vector<128x128xbf16>
    %cst = arith.constant dense<0.000000e+00> : vector<8x128xf32>
    %3 = tpu.matmul %1, %2, %cst {dimension_numbers = #tpu.dot_dimension_numbers<[1], [0], [0], [1], [0, 0, 1, 1], [], []>} : vector<8x128xbf16>, vector<128x128xbf16>, vector<8x128xf32> -> vector<8x128xf32>
    %c0_3 = arith.constant 0 : index
    %c0_4 = arith.constant 0 : index
    %4 = vector.load %arg3[%c0_3, %c0_4] : memref<1x128xf32, #tpu.memory_space<vmem>>, vector<1x128xf32>
    %5 = vector.broadcast %4 : vector<1x128xf32> to vector<8x128xf32>
    %6 = arith.addf %3, %5 : vector<8x128xf32>
    %cst_5 = arith.constant 0.000000e+00 : f32
    %7 = vector.broadcast %cst_5 : f32 to vector<8x128xf32>
    %8 = arith.maximumf %6, %7 : vector<8x128xf32>
    %9 = arith.truncf %8 : vector<8x128xf32> to vector<8x128xbf16>
    %c0_6 = arith.constant 0 : index
    %c0_7 = arith.constant 0 : index
    %10 = vector.load %arg4[%c0_6, %c0_7] : memref<128x128xbf16, #tpu.memory_space<vmem>>, vector<128x128xbf16>
    %cst_8 = arith.constant dense<0.000000e+00> : vector<8x128xf32>
    %11 = tpu.matmul %9, %10, %cst_8 {dimension_numbers = #tpu.dot_dimension_numbers<[1], [0], [0], [1], [0, 0, 1, 1], [], []>} : vector<8x128xbf16>, vector<128x128xbf16>, vector<8x128xf32> -> vector<8x128xf32>
    %c0_9 = arith.constant 0 : index
    %c0_10 = arith.constant 0 : index
    %12 = vector.load %arg5[%c0_9, %c0_10] : memref<1x128xf32, #tpu.memory_space<vmem>>, vector<1x128xf32>
    %13 = vector.broadcast %12 : vector<1x128xf32> to vector<8x128xf32>
    %14 = arith.addf %11, %13 : vector<8x128xf32>
    %15 = arith.addf %14, %0 : vector<8x128xf32>
    %cst_11 = arith.constant 0.000000e+00 : f32
    %16 = vector.broadcast %cst_11 : f32 to vector<8x128xf32>
    %17 = arith.maximumf %15, %16 : vector<8x128xf32>
    %c0_12 = arith.constant 0 : index
    %c0_13 = arith.constant 0 : index
    %18 = vector.load %arg6[%c0_12, %c0_13] : memref<1x128xf32, #tpu.memory_space<vmem>>, vector<1x128xf32>
    %19 = vector.broadcast %18 : vector<1x128xf32> to vector<8x128xf32>
    %20 = arith.mulf %17, %19 : vector<8x128xf32>
    %cst_14 = arith.constant dense<0.000000e+00> : vector<8xf32>
    %21 = vector.multi_reduction <add>, %20, %cst_14 [1] : vector<8x128xf32> to vector<8xf32>
    %22 = vector.shape_cast %21 : vector<8xf32> to vector<8x1xf32>
    %c0_15 = arith.constant 0 : index
    %c0_16 = arith.constant 0 : index
    %23 = memref.load %arg7[%c0_15, %c0_16] : memref<1x1xf32, #tpu.memory_space<smem>>
    %24 = vector.broadcast %23 : f32 to vector<8x1xf32>
    %25 = arith.addf %22, %24 : vector<8x1xf32>
    %26 = vector.shape_cast %25 : vector<8x1xf32> to vector<8x1xf32>
    %27 = vector.broadcast %26 : vector<8x1xf32> to vector<8x128xf32>
    %c0_17 = arith.constant 0 : index
    %c0_18 = arith.constant 0 : index
    %28 = vector.load %arg8[%c0_17, %c0_18] : memref<8x128xf32, #tpu.memory_space<vmem>>, vector<8x128xf32>
    tpu.vector_store %arg8[%c0_17, %c0_18], %27 {strides = array<i32>} : memref<8x128xf32, #tpu.memory_space<vmem>>, vector<8x128xf32>,
    return
  }
  func.func @transform_0(%arg0: i32) -> (i32, i32) {
    %c0_i32 = arith.constant 0 : i32
    %c0_i32_0 = arith.constant 0 : i32
    return %arg0, %c0_i32 : i32, i32
  }
  func.func @transform_1(%arg0: i32) -> (i32, i32) {
    %c0_i32 = arith.constant 0 : i32
    %c0_i32_0 = arith.constant 0 : i32
    %c0_i32_1 = arith.constant 0 : i32
    return %c0_i32, %c0_i32_0 : i32, i32
  }
  func.func @transform_2(%arg0: i32) -> (i32, i32) {
    %c0_i32 = arith.constant 0 : i32
    %c0_i32_0 = arith.constant 0 : i32
    %c0_i32_1 = arith.constant 0 : i32
    return %c0_i32, %c0_i32_0 : i32, i32
  }
  func.func @transform_3(%arg0: i32) -> (i32, i32) {
    %c0_i32 = arith.constant 0 : i32
    %c0_i32_0 = arith.constant 0 : i32
    %c0_i32_1 = arith.constant 0 : i32
    return %c0_i32, %c0_i32_0 : i32, i32
  }
  func.func @transform_4(%arg0: i32) -> (i32, i32) {
    %c0_i32 = arith.constant 0 : i32
    %c0_i32_0 = arith.constant 0 : i32
    %c0_i32_1 = arith.constant 0 : i32
    return %c0_i32, %c0_i32_0 : i32, i32
  }
  func.func @transform_5(%arg0: i32) -> (i32, i32) {
    %c0_i32 = arith.constant 0 : i32
    %c0_i32_0 = arith.constant 0 : i32
    %c0_i32_1 = arith.constant 0 : i32
    return %c0_i32, %c0_i32_0 : i32, i32
  }
  func.func @transform_6(%arg0: i32) -> (i32, i32) {
    %c0_i32 = arith.constant 0 : i32
    %c0_i32_0 = arith.constant 0 : i32
    %c0_i32_1 = arith.constant 0 : i32
    return %c0_i32, %c0_i32_0 : i32, i32
  }
  func.func @transform_7(%arg0: i32) -> (i32, i32) {
    %c0_i32 = arith.constant 0 : i32
    %c0_i32_0 = arith.constant 0 : i32
    return %arg0, %c0_i32 : i32, i32
  }
}

</mosaic_0001>

<llo_original>
// kernel: tpu_custom_call.1
$region0: #{tpu_custom_call.1}
  #allocation0 [shape = 'u32[]', space=smem, size = 0x4, offset = 0x4, fixed_abs, tag = 'smem constant byte address 0x4 - core index']
  #allocation1 [shape = 'u32[144,128]{1,0:T(1,128)}', space=vmem, size = 0x12000, scoped, tag = 'internal scratch']
  #allocation2 [shape = 'f32[1,1]{1,0:T(1,128)S(6)}', space=smem, size = 0x200, scoped, tag = 'scoped memory for tpu_custom_call.1']
  %s0 = inlined_call_operand.hbm [shape: f32[8,128], index: 0, kind: input, shape index: {}]
  %s1 = inlined_call_operand.hbm [shape: bf16[128,128], index: 1, kind: input, shape index: {}]
  %s2 = inlined_call_operand.vmem [shape: f32[1,128], index: 2, kind: input, shape index: {}]
  %s3 = inlined_call_operand.hbm [shape: bf16[128,128], index: 3, kind: input, shape index: {}]
  %s4 = inlined_call_operand.vmem [shape: f32[1,128], index: 4, kind: input, shape index: {}]
  %s5 = inlined_call_operand.vmem [shape: f32[1,128], index: 5, kind: input, shape index: {}]
  %s6 = inlined_call_operand.<no memory space> [shape: f32[1,1], index: 6, kind: input, shape index: {}]
  %s7 = inlined_call_operand.hbm [shape: f32[8,128], index: 7, kind: output, shape index: {}]
  %s8 = sld [smem:[#allocation0]]
  $region50: #{tpu_custom_call.1} parent=0
    _
  %s10 = ssub.s32 1, %s8
  %s11 = scalar_select 0, %s10, %s8
  %12 = sst [smem:[#allocation2]] %s6
  $region1: #{tpu_custom_call.1} parent=0
    #allocation3 [shape = 'u8[4096]{0}', space=vmem, size = 0x1000, scoped, tag = 'input window, operand 0, single buffered']
    #allocation4 [shape = 's32[1]{0}', space=sflag, size = 0x4, scoped, tag = 'scoped memory for tpu_custom_call.1']
    #allocation5 [shape = 's32[1]{0}', space=sflag, size = 0x4, scoped, tag = 'scoped memory for tpu_custom_call.1']
    #allocation6 [shape = 'u8[32768]{0}', space=vmem, size = 0x8000, scoped, tag = 'input window, operand 1, single buffered']
    #allocation7 [shape = 's32[1]{0}', space=sflag, size = 0x4, scoped, tag = 'scoped memory for tpu_custom_call.1']
    #allocation8 [shape = 'u8[32768]{0}', space=vmem, size = 0x8000, scoped, tag = 'input window, operand 3, single buffered']
    #allocation9 [shape = 'u8[4096]{0}', space=vmem, size = 0x1000, scoped, tag = 'output window, operand 0, single buffered']
    %13 = vsyncpa [#allocation4], 0
    %14 = vsyncpa [#allocation7], 0
    %15 = vsyncpa [#allocation5], 0
    // Predicated region
    $region2: #{tpu_custom_call.1} parent=1 // pred_check
      _
    $region3: #{tpu_custom_call.1} parent=1 // pred_check_branch
      %17 = sbr.rel (0) target = $region5
    $region4: #{tpu_custom_call.1} parent=1 // pred_region
      %s19 = ssub.s32 128, 128
      %20 = vsyncadd [#allocation4], %s19
      %s22 = sshll.u32 [#allocation3], 4
      %s23 = int_to_ptr.vmem [resolvable:$true] %s22
      %25 = dma.hbm_to_vmem [thread:$0]  %s0, 128, %s23, [#allocation4]
    $region5: #{tpu_custom_call.1} parent=1 // pred_fallthru
      _
    // Predicated region
    $region6: #{tpu_custom_call.1} parent=1 // pred_check
      _
    $region7: #{tpu_custom_call.1} parent=1 // pred_check_branch
      %27 = sbr.rel (0) target = $region9
    $region8: #{tpu_custom_call.1} parent=1 // pred_region
      %s29 = ssub.s32 1024, 1024
      %30 = vsyncadd [#allocation7], %s29
      %s31 = sshll.u32 [#allocation6], 4
      %s32 = int_to_ptr.vmem [resolvable:$true] %s31
      %37 = dma.hbm_to_vmem [thread:$0]  %s1, 1024, %s32, [#allocation7], 64, 64, 4
    $region9: #{tpu_custom_call.1} parent=1 // pred_fallthru
      _
    // Predicated region
    $region10: #{tpu_custom_call.1} parent=1 // pred_check
      _
    $region11: #{tpu_custom_call.1} parent=1 // pred_check_branch
      %39 = sbr.rel (0) target = $region13
    $region12: #{tpu_custom_call.1} parent=1 // pred_region
      _
    $region13: #{tpu_custom_call.1} parent=1 // pred_fallthru
      _
    // Predicated region
    $region14: #{tpu_custom_call.1} parent=1 // pred_check
      _
    $region15: #{tpu_custom_call.1} parent=1 // pred_check_branch
      %41 = sbr.rel (0) target = $region17
    $region16: #{tpu_custom_call.1} parent=1 // pred_region
      %s43 = ssub.s32 1024, 1024
      %44 = vsyncadd [#allocation7], %s43
      %s45 = sshll.u32 [#allocation8], 4
      %s46 = int_to_ptr.vmem [resolvable:$true] %s45
      %51 = dma.hbm_to_vmem [thread:$0]  %s3, 1024, %s46, [#allocation7], 64, 64, 4
    $region17: #{tpu_custom_call.1} parent=1 // pred_fallthru
      _
    // Predicated region
    $region18: #{tpu_custom_call.1} parent=1 // pred_check
      _
    $region19: #{tpu_custom_call.1} parent=1 // pred_check_branch
      %53 = sbr.rel (0) target = $region21
    $region20: #{tpu_custom_call.1} parent=1 // pred_region
      _
    $region21: #{tpu_custom_call.1} parent=1 // pred_fallthru
      _
    // Predicated region
    $region22: #{tpu_custom_call.1} parent=1 // pred_check
      _
    $region23: #{tpu_custom_call.1} parent=1 // pred_check_branch
      %55 = sbr.rel (0) target = $region25
    $region24: #{tpu_custom_call.1} parent=1 // pred_region
      _
    $region25: #{tpu_custom_call.1} parent=1 // pred_fallthru
      _
    // Predicated region
    $region26: #{tpu_custom_call.1} parent=1 // pred_check
      _
    $region27: #{tpu_custom_call.1} parent=1 // pred_check_branch
      %57 = sbr.rel (0) target = $region29
    $region28: #{tpu_custom_call.1} parent=1 // pred_region
      _
    $region29: #{tpu_custom_call.1} parent=1 // pred_fallthru
      _
    // Predicated region
    $region30: #{tpu_custom_call.1} parent=1 // pred_check
      _
    $region31: #{tpu_custom_call.1} parent=1 // pred_check_branch
      %59 = sbr.rel (0) target = $region33
    $region32: #{tpu_custom_call.1} parent=1 // pred_region
      %60 = dma.done [#allocation4], 128
    $region33: #{tpu_custom_call.1} parent=1 // pred_fallthru
      _
    // Predicated region
    $region34: #{tpu_custom_call.1} parent=1 // pred_check
      _
    $region35: #{tpu_custom_call.1} parent=1 // pred_check_branch
      %62 = sbr.rel (0) target = $region37
    $region36: #{tpu_custom_call.1} parent=1 // pred_region
      %63 = dma.done [#allocation7], 1024
    $region37: #{tpu_custom_call.1} parent=1 // pred_fallthru
      _
    // Predicated region
    $region38: #{tpu_custom_call.1} parent=1 // pred_check
      _
    $region39: #{tpu_custom_call.1} parent=1 // pred_check_branch
      %65 = sbr.rel (0) target = $region41
    $region40: #{tpu_custom_call.1} parent=1 // pred_region
      %66 = dma.done [#allocation7], 1024
    $region41: #{tpu_custom_call.1} parent=1 // pred_fallthru
      _
    %v68 = vld [vmem:[#allocation3] sm:$0xff]
    %v69 = vpack.c.bf16 %v68, %v68
    %v70 = vld [vmem:[#allocation6] sm:$0xf]
    %v71 = vld [vmem:[#allocation6 + $0x4] sm:$0xf]
    %v72 = vld [vmem:[#allocation6 + $0x8] sm:$0xf]
    %v73 = vld [vmem:[#allocation6 + $0xc] sm:$0xf]
    %v74 = vld [vmem:[#allocation6 + $0x10] sm:$0xf]
    %v75 = vld [vmem:[#allocation6 + $0x14] sm:$0xf]
    %v76 = vld [vmem:[#allocation6 + $0x18] sm:$0xf]
    %v77 = vld [vmem:[#allocation6 + $0x1c] sm:$0xf]
    %v78 = vld [vmem:[#allocation6 + $0x20] sm:$0xf]
    %v79 = vld [vmem:[#allocation6 + $0x24] sm:$0xf]
    %v80 = vld [vmem:[#allocation6 + $0x28] sm:$0xf]
    %v81 = vld [vmem:[#allocation6 + $0x2c] sm:$0xf]
    %v82 = vld [vmem:[#allocation6 + $0x30] sm:$0xf]
    %v83 = vld [vmem:[#allocation6 + $0x34] sm:$0xf]
    %v84 = vld [vmem:[#allocation6 + $0x38] sm:$0xf]
    %v85 = vld [vmem:[#allocation6 + $0x3c] sm:$0xf]
    %v86 = vld [vmem:[%s2] sm:$0x1]
    %v88 = vlaneseq
    %v89 = vshrl.u32 %v88, 7
    %v90 = vsub.s32 0, %v89
    %v91 = vrot.slane %v86, %v90
    %v109 = vunpack.c.l.b16 %v70
    %v110 = vunpack.c.l.b16 %v71
    %v111 = vunpack.c.l.b16 %v72
    %v112 = vunpack.c.l.b16 %v73
    %v113 = vunpack.c.l.b16 %v74
    %v114 = vunpack.c.l.b16 %v75
    %v115 = vunpack.c.l.b16 %v76
    %v116 = vunpack.c.l.b16 %v77
    %v117 = vunpack.c.l.b16 %v78
    %v118 = vunpack.c.l.b16 %v79
    %v119 = vunpack.c.l.b16 %v80
    %v120 = vunpack.c.l.b16 %v81
    %v121 = vunpack.c.l.b16 %v82
    %v122 = vunpack.c.l.b16 %v83
    %v123 = vunpack.c.l.b16 %v84
    %v124 = vunpack.c.l.b16 %v85
    %v125 = vpack.c.b16 %v110, %v109
    %v126 = vpack.c.b16 %v112, %v111
    %v127 = vpack.c.b16 %v114, %v113
    %v128 = vpack.c.b16 %v116, %v115
    %v129 = vpack.c.b16 %v118, %v117
    %v130 = vpack.c.b16 %v120, %v119
    %v131 = vpack.c.b16 %v122, %v121
    %v132 = vpack.c.b16 %v124, %v123
    %141 = vmatprep.subr.bf16.mxu0 0
    %142 = vmatpush1.bf16.msra.mxu0 %v132
    %143 = vmatprep.subr.bf16.mxu0 0
    %144 = vmatpush1.bf16.msra.mxu0 %v131
    %145 = vmatprep.subr.bf16.mxu0 0
    %146 = vmatpush1.bf16.msra.mxu0 %v130
    %147 = vmatprep.subr.bf16.mxu0 0
    %148 = vmatpush1.bf16.msra.mxu0 %v129
    %149 = vmatprep.subr.bf16.mxu0 0
    %150 = vmatpush1.bf16.msra.mxu0 %v128
    %151 = vmatprep.subr.bf16.mxu0 0
    %152 = vmatpush1.bf16.msra.mxu0 %v127
    %153 = vmatprep.subr.bf16.mxu0 0
    %154 = vmatpush1.bf16.msra.mxu0 %v126
    %155 = vmatprep.subr.bf16.mxu0 0
    %156 = vmatpush1.bf16.msra.mxu0 %v125
    %157 = vmatprep.subr.bf16.mxu0 0
    %158 = vmatpush2.bf16.msra.mxu0 0
    %159 = vmatprep.subr.bf16.mxu0 0
    %160 = vmatpush2.bf16.msra.mxu0 0
    %161 = vmatprep.subr.bf16.mxu0 0
    %162 = vmatpush2.bf16.msra.mxu0 0
    %163 = vmatprep.subr.bf16.mxu0 0
    %164 = vmatpush2.bf16.msra.mxu0 0
    %165 = vmatprep.subr.bf16.mxu0 0
    %166 = vmatpush2.bf16.msra.mxu0 0
    %167 = vmatprep.subr.bf16.mxu0 0
    %168 = vmatpush2.bf16.msra.mxu0 0
    %169 = vmatprep.subr.bf16.mxu0 0
    %170 = vmatpush2.bf16.msra.mxu0 0
    %171 = vmatprep.subr.bf16.mxu0 0
    %172 = vmatpush2.bf16.msra.mxu0 0
    %173 = vmatprep.mubr.bf16.mxu0 0
    %174 = vmatmul.mubr.bf16.gmra.mxu0 %v69
    %v175 = vpop.f32.mrf.mxu0
    %v176 = vadd.f32 %v91, %v175
    %v177 = vpop.f32.mrf.mxu0
    %v178 = vpop.f32.mrf.mxu0
    %v179 = vpop.f32.mrf.mxu0
    %180 = vdwg.mxu0
    %v181 = vmax.f32 %v176, 0.0
    %v182 = vpack.c.bf16 %v181, %v181
    %v183 = vld [vmem:[#allocation8] sm:$0xf]
    %v184 = vld [vmem:[#allocation8 + $0x4] sm:$0xf]
    %v185 = vld [vmem:[#allocation8 + $0x8] sm:$0xf]
    %v186 = vld [vmem:[#allocation8 + $0xc] sm:$0xf]
    %v187 = vld [vmem:[#allocation8 + $0x10] sm:$0xf]
    %v188 = vld [vmem:[#allocation8 + $0x14] sm:$0xf]
    %v189 = vld [vmem:[#allocation8 + $0x18] sm:$0xf]
    %v190 = vld [vmem:[#allocation8 + $0x1c] sm:$0xf]
    %v191 = vld [vmem:[#allocation8 + $0x20] sm:$0xf]
    %v192 = vld [vmem:[#allocation8 + $0x24] sm:$0xf]
    %v193 = vld [vmem:[#allocation8 + $0x28] sm:$0xf]
    %v194 = vld [vmem:[#allocation8 + $0x2c] sm:$0xf]
    %v195 = vld [vmem:[#allocation8 + $0x30] sm:$0xf]
    %v196 = vld [vmem:[#allocation8 + $0x34] sm:$0xf]
    %v197 = vld [vmem:[#allocation8 + $0x38] sm:$0xf]
    %v198 = vld [vmem:[#allocation8 + $0x3c] sm:$0xf]
    %v199 = vld [vmem:[%s4] sm:$0x1]
    %v201 = vlaneseq
    %v202 = vshrl.u32 %v201, 7
    %v203 = vsub.s32 0, %v202
    %v204 = vrot.slane %v199, %v203
    %v222 = vunpack.c.l.b16 %v183
    %v223 = vunpack.c.l.b16 %v184
    %v224 = vunpack.c.l.b16 %v185
    %v225 = vunpack.c.l.b16 %v186
    %v226 = vunpack.c.l.b16 %v187
    %v227 = vunpack.c.l.b16 %v188
    %v228 = vunpack.c.l.b16 %v189
    %v229 = vunpack.c.l.b16 %v190
    %v230 = vunpack.c.l.b16 %v191
    %v231 = vunpack.c.l.b16 %v192
    %v232 = vunpack.c.l.b16 %v193
    %v233 = vunpack.c.l.b16 %v194
    %v234 = vunpack.c.l.b16 %v195
    %v235 = vunpack.c.l.b16 %v196
    %v236 = vunpack.c.l.b16 %v197
    %v237 = vunpack.c.l.b16 %v198
    %v238 = vpack.c.b16 %v223, %v222
    %v239 = vpack.c.b16 %v225, %v224
    %v240 = vpack.c.b16 %v227, %v226
    %v241 = vpack.c.b16 %v229, %v228
    %v242 = vpack.c.b16 %v231, %v230
    %v243 = vpack.c.b16 %v233, %v232
    %v244 = vpack.c.b16 %v235, %v234
    %v245 = vpack.c.b16 %v237, %v236
    %254 = vmatprep.subr.bf16.mxu0 0
    %255 = vmatpush1.bf16.msra.mxu0 %v245
    %256 = vmatprep.subr.bf16.mxu0 0
    %257 = vmatpush1.bf16.msra.mxu0 %v244
    %258 = vmatprep.subr.bf16.mxu0 0
    %259 = vmatpush1.bf16.msra.mxu0 %v243
    %260 = vmatprep.subr.bf16.mxu0 0
    %261 = vmatpush1.bf16.msra.mxu0 %v242
    %262 = vmatprep.subr.bf16.mxu0 0
    %263 = vmatpush1.bf16.msra.mxu0 %v241
    %264 = vmatprep.subr.bf16.mxu0 0
    %265 = vmatpush1.bf16.msra.mxu0 %v240
    %266 = vmatprep.subr.bf16.mxu0 0
    %267 = vmatpush1.bf16.msra.mxu0 %v239
    %268 = vmatprep.subr.bf16.mxu0 0
    %269 = vmatpush1.bf16.msra.mxu0 %v238
    %270 = vmatprep.subr.bf16.mxu0 0
    %271 = vmatpush2.bf16.msra.mxu0 0
    %272 = vmatprep.subr.bf16.mxu0 0
    %273 = vmatpush2.bf16.msra.mxu0 0
    %274 = vmatprep.subr.bf16.mxu0 0
    %275 = vmatpush2.bf16.msra.mxu0 0
    %276 = vmatprep.subr.bf16.mxu0 0
    %277 = vmatpush2.bf16.msra.mxu0 0
    %278 = vmatprep.subr.bf16.mxu0 0
    %279 = vmatpush2.bf16.msra.mxu0 0
    %280 = vmatprep.subr.bf16.mxu0 0
    %281 = vmatpush2.bf16.msra.mxu0 0
    %282 = vmatprep.subr.bf16.mxu0 0
    %283 = vmatpush2.bf16.msra.mxu0 0
    %284 = vmatprep.subr.bf16.mxu0 0
    %285 = vmatpush2.bf16.msra.mxu0 0
    %286 = vmatprep.mubr.bf16.mxu0 0
    %287 = vmatmul.mubr.bf16.gmra.mxu0 %v182
    %v288 = vpop.f32.mrf.mxu0
    %v289 = vadd.f32 %v204, %v288
    %v290 = vpop.f32.mrf.mxu0
    %v291 = vpop.f32.mrf.mxu0
    %v292 = vpop.f32.mrf.mxu0
    %293 = vdwg.mxu0
    %v294 = vadd.f32 %v289, %v68
    %v295 = vmax.f32 %v294, 0.0
    %v296 = vld [vmem:[%s5] sm:$0x1]
    %v298 = vlaneseq
    %v299 = vshrl.u32 %v298, 7
    %v300 = vsub.s32 0, %v299
    %v301 = vrot.slane %v296, %v300
    %v303 = vmul.f32 %v295, %v301
    %304 = vadd.xlane.f32.xlu0 %v303
    %v305 = vpop.xlane.xlu0 %304
    %s306 = sld [smem:[#allocation2]]
    %v307 = vstv %s306
    %v308 = vadd.f32 %v305, %v307
    %309 = vst [vmem:[#allocation9] sm:$0xff] %v308
    // Predicated region
    $region42: #{tpu_custom_call.1} parent=1 // pred_check
      _
    $region43: #{tpu_custom_call.1} parent=1 // pred_check_branch
      %311 = sbr.rel (0) target = $region45
    $region44: #{tpu_custom_call.1} parent=1 // pred_region
      %s313 = ssub.s32 128, 128
      %314 = vsyncadd [#allocation5], %s313
      %s316 = sshll.u32 [#allocation9], 4
      %s317 = int_to_ptr.vmem [resolvable:$true] %s316
      %319 = dma.vmem_to_hbm [thread:$0]  %s317, 128, %s7, [#allocation5]
    $region45: #{tpu_custom_call.1} parent=1 // pred_fallthru
      _
    // Predicated region
    $region46: #{tpu_custom_call.1} parent=1 // pred_check
      _
    $region47: #{tpu_custom_call.1} parent=1 // pred_check_branch
      %321 = sbr.rel (0) target = $region49
    $region48: #{tpu_custom_call.1} parent=1 // pred_region
      %322 = dma.done [#allocation5], 128
    $region49: #{tpu_custom_call.1} parent=1 // pred_fallthru
      _
    %323 = vsyncpa [#allocation4], 1
    %324 = vsyncpa [#allocation7], 1
    %325 = vsyncpa [#allocation5], 1

</llo_original>
